<compile_context>
chip_gen: v7x
topology: tpu7x:2x2x1
jax: 0.10.0
libtpu: 0.0.40
codegen_flags: <defaults>
</compile_context>

<pallas_src>
import jax
import jax.numpy as jnp
from jax.experimental import pallas as pl
from jax.experimental.pallas import tpu as pltpu


def _round_up(x, m):
    return ((x + m - 1) // m) * m


def _two_stage_kernel(x_ref, w1_ref, b1_ref, w2_ref, b2_ref, o_ref):
    # x_ref : (TM, D)  f32    tile of token rows (cast to bf16 in-kernel)
    # w1_ref: (D, H)   bf16   bottleneck weight (in, out) — resident
    # b1_ref: (1, H)   f32
    # w2_ref: (H, D)   bf16   expansion weight (in, out) — resident
    # b2_ref: (1, D)   f32
    # o_ref : (TM, D)  f32
    x = x_ref[...].astype(jnp.bfloat16)          # VPU cast; MXU operand is bf16
    h = jnp.dot(x, w1_ref[...], preferred_element_type=jnp.float32) + b1_ref[...]
    h = h.astype(jnp.bfloat16)                   # bf16 MXU operand; accumulation stays f32
    out = jnp.dot(h, w2_ref[...], preferred_element_type=jnp.float32) + b2_ref[...]
    o_ref[...] = out.astype(o_ref.dtype)


def _fused_kernel(x_ref, wc_ref, bc_ref, o_ref):
    # x_ref : (TM, D) f32 ; wc_ref: (D, D) bf16 ; bc_ref: (1, D) f32
    x = x_ref[...].astype(jnp.bfloat16)
    out = jnp.dot(x, wc_ref[...], preferred_element_type=jnp.float32)
    o_ref[...] = (out + bc_ref[...]).astype(o_ref.dtype)


def superposition_translate(enc_hidden, w1, b1, w2, b2, *, tm=256, fuse=False):
    """Apply bottleneck + expansion to encoder hidden states.

    enc_hidden: (B, S, D_enc) float32
    w1: (H, D_enc)   (PyTorch nn.Linear layout: out, in)
    b1: (H,)
    w2: (D_enc, H)
    b2: (D_enc,)
    fuse: if True, algebraically fold the two Linears into one D_enc x D_enc
          affine map (exact — there is no nonlinearity between them).
    returns: (B, S, D_enc) float32
    """
    B, S, D = enc_hidden.shape
    H = w1.shape[0]
    M = B * S

    # Tile selection: large tiles amortize the ~0.35 us/step pipeline overhead
    # and fill the MXU, but never grow the tile past the (padded) row count.
    # Multiple of 16 keeps bf16/f32 sublane tiling legal on every block.
    tm_eff = max(16, _round_up(min(tm, _round_up(M, 16)), 16))
    m_pad = _round_up(M, tm_eff)
    grid = m_pad // tm_eff

    x2d = enc_hidden.reshape(M, D)               # stays f32; cast happens in-kernel
    if m_pad != M:
        x2d = jnp.pad(x2d, ((0, m_pad - M), (0, 0)))

    out_dtype = enc_hidden.dtype

    # VMEM budget: double-buffered x/out tiles + resident weights (+ slack).
    x_tile_bytes = tm_eff * D * 4
    out_tile_bytes = tm_eff * D * 4
    if fuse:
        weight_bytes = D * D * 2 + D * 4
    else:
        weight_bytes = (D * H + H * D) * 2 + (H + D) * 4
    vmem_needed = 2 * (x_tile_bytes + out_tile_bytes) + 2 * weight_bytes + (2 << 20)
    vmem_limit = int(min(max(vmem_needed, 16 << 20), 48 << 20))

    compiler_params = pltpu.CompilerParams(
        dimension_semantics=("parallel",),
        vmem_limit_bytes=vmem_limit,
    )

    if fuse:
        # out = x @ (W1^T W2^T) + (b1 W2^T + b2)  — exact rewrite, f32 precompute.
        w_comb = (w1.T.astype(jnp.float32) @ w2.T.astype(jnp.float32))        # (D, D)
        b_comb = (b1.astype(jnp.float32) @ w2.T.astype(jnp.float32)) + b2     # (D,)
        w_comb_b = w_comb.astype(jnp.bfloat16)
        b_comb_2d = b_comb.reshape(1, D)

        cost = pl.CostEstimate(
            flops=2 * m_pad * D * D,
            transcendentals=0,
            bytes_accessed=m_pad * D * 4 + m_pad * D * 4 + w_comb_b.size * 2 + D * 4,
        )

        out2d = pl.pallas_call(
            _fused_kernel,
            out_shape=jax.ShapeDtypeStruct((m_pad, D), out_dtype),
            grid_spec=pltpu.PrefetchScalarGridSpec(
                num_scalar_prefetch=0,
                grid=(grid,),
                in_specs=[
                    pl.BlockSpec((tm_eff, D), lambda i: (i, 0)),   # x rows (f32)
                    pl.BlockSpec((D, D), lambda i: (0, 0)),        # W_comb resident
                    pl.BlockSpec((1, D), lambda i: (0, 0)),        # b_comb
                ],
                out_specs=pl.BlockSpec((tm_eff, D), lambda i: (i, 0)),
            ),
            compiler_params=compiler_params,
            cost_estimate=cost,
        )(x2d, w_comb_b, b_comb_2d)
    else:
        w1_t = w1.T.astype(jnp.bfloat16)            # (D, H)
        w2_t = w2.T.astype(jnp.bfloat16)            # (H, D)
        b1_2d = b1.astype(jnp.float32).reshape(1, H)
        b2_2d = b2.astype(jnp.float32).reshape(1, D)

        cost = pl.CostEstimate(
            flops=4 * m_pad * D * H,
            transcendentals=0,
            bytes_accessed=(m_pad * D * 4 + m_pad * D * 4
                            + w1_t.size * 2 + w2_t.size * 2 + (H + D) * 4),
        )

        out2d = pl.pallas_call(
            _two_stage_kernel,
            out_shape=jax.ShapeDtypeStruct((m_pad, D), out_dtype),
            grid_spec=pltpu.PrefetchScalarGridSpec(
                num_scalar_prefetch=0,
                grid=(grid,),
                in_specs=[
                    pl.BlockSpec((tm_eff, D), lambda i: (i, 0)),   # x rows (f32)
                    pl.BlockSpec((D, H), lambda i: (0, 0)),        # W1 resident
                    pl.BlockSpec((1, H), lambda i: (0, 0)),        # b1
                    pl.BlockSpec((H, D), lambda i: (0, 0)),        # W2 resident
                    pl.BlockSpec((1, D), lambda i: (0, 0)),        # b2
                ],
                out_specs=pl.BlockSpec((tm_eff, D), lambda i: (i, 0)),
            ),
            compiler_params=compiler_params,
            cost_estimate=cost,
        )(x2d, w1_t, b1_2d, w2_t, b2_2d)

    return out2d[:M].reshape(B, S, D)


if __name__ == "__main__":
    # Small shapes consistent with the module's forward:
    #   B=2 sentences, S=8 tokens, encoder_dim=256, hidden_size=128.
    B, S, D_ENC, HID = 2, 8, 256, 128

    key = jax.random.PRNGKey(0)
    k_x, k_w1, k_b1, k_w2, k_b2 = jax.random.split(key, 5)

    # Stand-in for encoder_outputs[0] (pretrained encoder not reproducible).
    enc_hidden = jax.random.normal(k_x, (B, S, D_ENC), dtype=jnp.float32)

    # Deterministic parameter init mirroring the module:
    #   torch.nn.init.uniform_(weight, -0.5, 0.5); bias ~ default Linear init.
    w1 = jax.random.uniform(k_w1, (HID, D_ENC), minval=-0.5, maxval=0.5, dtype=jnp.float32)
    b1 = jax.random.uniform(k_b1, (HID,),
                            minval=-1.0 / jnp.sqrt(D_ENC), maxval=1.0 / jnp.sqrt(D_ENC),
                            dtype=jnp.float32)
    w2 = jax.random.uniform(k_w2, (D_ENC, HID), minval=-0.5, maxval=0.5, dtype=jnp.float32)
    b2 = jax.random.uniform(k_b2, (D_ENC,),
                            minval=-1.0 / jnp.sqrt(HID), maxval=1.0 / jnp.sqrt(HID),
                            dtype=jnp.float32)

    # --- two-stage (faithful / trainable-form) path ---
    out = superposition_translate(enc_hidden, w1, b1, w2, b2)
    out = jax.block_until_ready(out)
    assert out.shape == (B, S, D_ENC)

    # Reference with matching bf16 operand casts (f32 accumulation).
    xb = enc_hidden.reshape(-1, D_ENC).astype(jnp.bfloat16)
    h_ref = jnp.dot(xb, w1.T.astype(jnp.bfloat16),
                    preferred_element_type=jnp.float32) + b1
    ref2 = jnp.dot(h_ref.astype(jnp.bfloat16), w2.T.astype(jnp.bfloat16),
                   preferred_element_type=jnp.float32) + b2
    ref2 = ref2.reshape(B, S, D_ENC)
    assert jnp.allclose(out, ref2, atol=1e-2, rtol=1e-2), "two-stage mismatch vs reference"

    # --- fused (inference) path: single D x D affine map, exact rewrite ---
    out_f = superposition_translate(enc_hidden, w1, b1, w2, b2, fuse=True)
    out_f = jax.block_until_ready(out_f)
    w_comb = w1.T @ w2.T
    b_comb = b1 @ w2.T + b2
    ref_f = (jnp.dot(xb, w_comb.astype(jnp.bfloat16),
                     preferred_element_type=jnp.float32) + b_comb).reshape(B, S, D_ENC)
    assert out_f.shape == (B, S, D_ENC)
    assert jnp.allclose(out_f, ref_f, atol=1e-2, rtol=1e-2), "fused mismatch vs reference"

    print("KERNEL_OK")
</pallas_src>

<mosaic_0001>
module attributes {stable_mosaic.version = 11 : i64} {
  func.func @_two_stage_kernel(%arg0: i32, %arg1: memref<16x256xf32, #tpu.memory_space<vmem>>, %arg2: memref<256x128xbf16, #tpu.memory_space<vmem>>, %arg3: memref<1x128xf32, #tpu.memory_space<vmem>>, %arg4: memref<128x256xbf16, #tpu.memory_space<vmem>>, %arg5: memref<1x256xf32, #tpu.memory_space<vmem>>, %arg6: memref<16x256xf32, #tpu.memory_space<vmem>>) attributes {dimension_semantics = [#tpu.dimension_semantics<parallel>], iteration_bounds = array<i64: 1>, scalar_prefetch = 0 : i64, scratch_operands = 0 : i64, tpu.core_type = #tpu.core_type<tc>, window_params = [{transform_indices = @transform_0, window_bounds = array<i64: 16, 256>}, {pipeline_mode = #tpu.pipeline_mode<synchronous>, transform_indices = @transform_1, window_bounds = array<i64: 256, 128>}, {pipeline_mode = #tpu.pipeline_mode<synchronous>, transform_indices = @transform_2, window_bounds = array<i64: 1, 128>}, {pipeline_mode = #tpu.pipeline_mode<synchronous>, transform_indices = @transform_3, window_bounds = array<i64: 128, 256>}, {pipeline_mode = #tpu.pipeline_mode<synchronous>, transform_indices = @transform_4, window_bounds = array<i64: 1, 256>}, {transform_indices = @transform_5, window_bounds = array<i64: 16, 256>}]} {
    %c0 = arith.constant 0 : index
    %c0_0 = arith.constant 0 : index
    %0 = vector.load %arg1[%c0, %c0_0] : memref<16x256xf32, #tpu.memory_space<vmem>>, vector<16x256xf32>
    %1 = arith.truncf %0 : vector<16x256xf32> to vector<16x256xbf16>
    %c0_1 = arith.constant 0 : index
    %c0_2 = arith.constant 0 : index
    %2 = vector.load %arg2[%c0_1, %c0_2] : memref<256x128xbf16, #tpu.memory_space<vmem>>, vector<256x128xbf16>
    %cst = arith.constant dense<0.000000e+00> : vector<16x128xf32>
    %3 = tpu.matmul %1, %2, %cst {dimension_numbers = #tpu.dot_dimension_numbers<[1], [0], [0], [1], [0, 0, 1, 1], [], []>} : vector<16x256xbf16>, vector<256x128xbf16>, vector<16x128xf32> -> vector<16x128xf32>
    %c0_3 = arith.constant 0 : index
    %c0_4 = arith.constant 0 : index
    %4 = vector.load %arg3[%c0_3, %c0_4] : memref<1x128xf32, #tpu.memory_space<vmem>>, vector<1x128xf32>
    %5 = vector.broadcast %4 : vector<1x128xf32> to vector<16x128xf32>
    %6 = arith.addf %3, %5 : vector<16x128xf32>
    %7 = arith.truncf %6 : vector<16x128xf32> to vector<16x128xbf16>
    %c0_5 = arith.constant 0 : index
    %c0_6 = arith.constant 0 : index
    %8 = vector.load %arg4[%c0_5, %c0_6] : memref<128x256xbf16, #tpu.memory_space<vmem>>, vector<128x256xbf16>
    %cst_7 = arith.constant dense<0.000000e+00> : vector<16x256xf32>
    %9 = tpu.matmul %7, %8, %cst_7 {dimension_numbers = #tpu.dot_dimension_numbers<[1], [0], [0], [1], [0, 0, 1, 1], [], []>} : vector<16x128xbf16>, vector<128x256xbf16>, vector<16x256xf32> -> vector<16x256xf32>
    %c0_8 = arith.constant 0 : index
    %c0_9 = arith.constant 0 : index
    %10 = vector.load %arg5[%c0_8, %c0_9] : memref<1x256xf32, #tpu.memory_space<vmem>>, vector<1x256xf32>
    %11 = vector.broadcast %10 : vector<1x256xf32> to vector<16x256xf32>
    %12 = arith.addf %9, %11 : vector<16x256xf32>
    %c0_10 = arith.constant 0 : index
    %c0_11 = arith.constant 0 : index
    %13 = vector.load %arg6[%c0_10, %c0_11] : memref<16x256xf32, #tpu.memory_space<vmem>>, vector<16x256xf32>
    tpu.vector_store %arg6[%c0_10, %c0_11], %12 {strides = array<i32>} : memref<16x256xf32, #tpu.memory_space<vmem>>, vector<16x256xf32>,
    return
  }
  func.func @transform_0(%arg0: i32) -> (i32, i32) {
    %c0_i32 = arith.constant 0 : i32
    %c0_i32_0 = arith.constant 0 : i32
    return %arg0, %c0_i32 : i32, i32
  }
  func.func @transform_1(%arg0: i32) -> (i32, i32) {
    %c0_i32 = arith.constant 0 : i32
    %c0_i32_0 = arith.constant 0 : i32
    %c0_i32_1 = arith.constant 0 : i32
    return %c0_i32, %c0_i32_0 : i32, i32
  }
  func.func @transform_2(%arg0: i32) -> (i32, i32) {
    %c0_i32 = arith.constant 0 : i32
    %c0_i32_0 = arith.constant 0 : i32
    %c0_i32_1 = arith.constant 0 : i32
    return %c0_i32, %c0_i32_0 : i32, i32
  }
  func.func @transform_3(%arg0: i32) -> (i32, i32) {
    %c0_i32 = arith.constant 0 : i32
    %c0_i32_0 = arith.constant 0 : i32
    %c0_i32_1 = arith.constant 0 : i32
    return %c0_i32, %c0_i32_0 : i32, i32
  }
  func.func @transform_4(%arg0: i32) -> (i32, i32) {
    %c0_i32 = arith.constant 0 : i32
    %c0_i32_0 = arith.constant 0 : i32
    %c0_i32_1 = arith.constant 0 : i32
    return %c0_i32, %c0_i32_0 : i32, i32
  }
  func.func @transform_5(%arg0: i32) -> (i32, i32) {
    %c0_i32 = arith.constant 0 : i32
    %c0_i32_0 = arith.constant 0 : i32
    return %arg0, %c0_i32 : i32, i32
  }
}

</mosaic_0001>

<llo_original>
// kernel: tpu_custom_call.1
$region0: #{tpu_custom_call.1}
  #allocation0 [shape = 'u32[]', space=smem, size = 0x4, offset = 0x4, fixed_abs, tag = 'smem constant byte address 0x4 - core index']
  #allocation1 [shape = 'u32[144,128]{1,0:T(1,128)}', space=vmem, size = 0x12000, scoped, tag = 'internal scratch']
  %s0 = inlined_call_operand.hbm [shape: f32[16,256], index: 0, kind: input, shape index: {}]
  %s1 = inlined_call_operand.hbm [shape: bf16[256,128], index: 1, kind: input, shape index: {}]
  %s2 = inlined_call_operand.vmem [shape: f32[1,128], index: 2, kind: input, shape index: {}]
  %s3 = inlined_call_operand.hbm [shape: bf16[128,256], index: 3, kind: input, shape index: {}]
  %s4 = inlined_call_operand.vmem [shape: f32[1,256], index: 4, kind: input, shape index: {}]
  %s5 = inlined_call_operand.hbm [shape: f32[16,256], index: 5, kind: output, shape index: {}]
  %s6 = sld [smem:[#allocation0]]
  $region42: #{tpu_custom_call.1} parent=0
    _
  %s8 = ssub.s32 1, %s6
  %s9 = scalar_select 0, %s8, %s6
  $region1: #{tpu_custom_call.1} parent=0
    #allocation2 [shape = 'u8[16384]{0}', space=vmem, size = 0x4000, scoped, tag = 'input window, operand 0, single buffered']
    #allocation3 [shape = 's32[1]{0}', space=sflag, size = 0x4, scoped, tag = 'scoped memory for tpu_custom_call.1']
    #allocation4 [shape = 's32[1]{0}', space=sflag, size = 0x4, scoped, tag = 'scoped memory for tpu_custom_call.1']
    #allocation5 [shape = 'u8[65536]{0}', space=vmem, size = 0x10000, scoped, tag = 'input window, operand 1, single buffered']
    #allocation6 [shape = 's32[1]{0}', space=sflag, size = 0x4, scoped, tag = 'scoped memory for tpu_custom_call.1']
    #allocation7 [shape = 'u8[65536]{0}', space=vmem, size = 0x10000, scoped, tag = 'input window, operand 3, single buffered']
    #allocation8 [shape = 'u8[16384]{0}', space=vmem, size = 0x4000, scoped, tag = 'output window, operand 0, single buffered']
    %10 = vsyncpa [#allocation3], 0
    %11 = vsyncpa [#allocation6], 0
    %12 = vsyncpa [#allocation4], 0
    // Predicated region
    $region2: #{tpu_custom_call.1} parent=1 // pred_check
      _
    $region3: #{tpu_custom_call.1} parent=1 // pred_check_branch
      %14 = sbr.rel (0) target = $region5
    $region4: #{tpu_custom_call.1} parent=1 // pred_region
      %s16 = ssub.s32 512, 512
      %17 = vsyncadd [#allocation3], %s16
      %s18 = sshll.u32 [#allocation2], 4
      %s19 = int_to_ptr.vmem [resolvable:$true] %s18
      %24 = dma.hbm_to_vmem [thread:$0]  %s0, 512, %s19, [#allocation3], 256, 256, 16
    $region5: #{tpu_custom_call.1} parent=1 // pred_fallthru
      _
    // Predicated region
    $region6: #{tpu_custom_call.1} parent=1 // pred_check
      _
    $region7: #{tpu_custom_call.1} parent=1 // pred_check_branch
      %26 = sbr.rel (0) target = $region9
    $region8: #{tpu_custom_call.1} parent=1 // pred_region
      %s28 = ssub.s32 2048, 2048
      %29 = vsyncadd [#allocation6], %s28
      %s30 = sshll.u32 [#allocation5], 4
      %s31 = int_to_ptr.vmem [resolvable:$true] %s30
      %36 = dma.hbm_to_vmem [thread:$0]  %s1, 2048, %s31, [#allocation6], 64, 64, 4
    $region9: #{tpu_custom_call.1} parent=1 // pred_fallthru
      _
    // Predicated region
    $region10: #{tpu_custom_call.1} parent=1 // pred_check
      _
    $region11: #{tpu_custom_call.1} parent=1 // pred_check_branch
      %38 = sbr.rel (0) target = $region13
    $region12: #{tpu_custom_call.1} parent=1 // pred_region
      _
    $region13: #{tpu_custom_call.1} parent=1 // pred_fallthru
      _
    // Predicated region
    $region14: #{tpu_custom_call.1} parent=1 // pred_check
      _
    $region15: #{tpu_custom_call.1} parent=1 // pred_check_branch
      %40 = sbr.rel (0) target = $region17
    $region16: #{tpu_custom_call.1} parent=1 // pred_region
      %s42 = ssub.s32 2048, 2048
      %43 = vsyncadd [#allocation6], %s42
      %s44 = sshll.u32 [#allocation7], 4
      %s45 = int_to_ptr.vmem [resolvable:$true] %s44
      %50 = dma.hbm_to_vmem [thread:$0]  %s3, 2048, %s45, [#allocation6], 128, 128, 8
    $region17: #{tpu_custom_call.1} parent=1 // pred_fallthru
      _
    // Predicated region
    $region18: #{tpu_custom_call.1} parent=1 // pred_check
      _
    $region19: #{tpu_custom_call.1} parent=1 // pred_check_branch
      %52 = sbr.rel (0) target = $region21
    $region20: #{tpu_custom_call.1} parent=1 // pred_region
      _
    $region21: #{tpu_custom_call.1} parent=1 // pred_fallthru
      _
    // Predicated region
    $region22: #{tpu_custom_call.1} parent=1 // pred_check
      _
    $region23: #{tpu_custom_call.1} parent=1 // pred_check_branch
      %54 = sbr.rel (0) target = $region25
    $region24: #{tpu_custom_call.1} parent=1 // pred_region
      %55 = dma.done [#allocation3], 512
    $region25: #{tpu_custom_call.1} parent=1 // pred_fallthru
      _
    // Predicated region
    $region26: #{tpu_custom_call.1} parent=1 // pred_check
      _
    $region27: #{tpu_custom_call.1} parent=1 // pred_check_branch
      %57 = sbr.rel (0) target = $region29
    $region28: #{tpu_custom_call.1} parent=1 // pred_region
      %58 = dma.done [#allocation6], 2048
    $region29: #{tpu_custom_call.1} parent=1 // pred_fallthru
      _
    // Predicated region
    $region30: #{tpu_custom_call.1} parent=1 // pred_check
      _
    $region31: #{tpu_custom_call.1} parent=1 // pred_check_branch
      %60 = sbr.rel (0) target = $region33
    $region32: #{tpu_custom_call.1} parent=1 // pred_region
      %61 = dma.done [#allocation6], 2048
    $region33: #{tpu_custom_call.1} parent=1 // pred_fallthru
      _
    %v63 = vld [vmem:[#allocation2] sm:$0xff]
    %v64 = vld [vmem:[#allocation2 + $0x8] sm:$0xff]
    %v65 = vld [vmem:[#allocation2 + $0x10] sm:$0xff]
    %v66 = vld [vmem:[#allocation2 + $0x18] sm:$0xff]
    %v67 = vpack.c.bf16 %v65, %v63
    %v68 = vpack.c.bf16 %v66, %v64
    %v69 = vld [vmem:[#allocation5] sm:$0xf]
    %v70 = vld [vmem:[#allocation5 + $0x4] sm:$0xf]
    %v71 = vld [vmem:[#allocation5 + $0x8] sm:$0xf]
    %v72 = vld [vmem:[#allocation5 + $0xc] sm:$0xf]
    %v73 = vld [vmem:[#allocation5 + $0x10] sm:$0xf]
    %v74 = vld [vmem:[#allocation5 + $0x14] sm:$0xf]
    %v75 = vld [vmem:[#allocation5 + $0x18] sm:$0xf]
    %v76 = vld [vmem:[#allocation5 + $0x1c] sm:$0xf]
    %v77 = vld [vmem:[#allocation5 + $0x20] sm:$0xf]
    %v78 = vld [vmem:[#allocation5 + $0x24] sm:$0xf]
    %v79 = vld [vmem:[#allocation5 + $0x28] sm:$0xf]
    %v80 = vld [vmem:[#allocation5 + $0x2c] sm:$0xf]
    %v81 = vld [vmem:[#allocation5 + $0x30] sm:$0xf]
    %v82 = vld [vmem:[#allocation5 + $0x34] sm:$0xf]
    %v83 = vld [vmem:[#allocation5 + $0x38] sm:$0xf]
    %v84 = vld [vmem:[#allocation5 + $0x3c] sm:$0xf]
    %v85 = vld [vmem:[#allocation5 + $0x40] sm:$0xf]
    %v86 = vld [vmem:[#allocation5 + $0x44] sm:$0xf]
    %v87 = vld [vmem:[#allocation5 + $0x48] sm:$0xf]
    %v88 = vld [vmem:[#allocation5 + $0x4c] sm:$0xf]
    %v89 = vld [vmem:[#allocation5 + $0x50] sm:$0xf]
    %v90 = vld [vmem:[#allocation5 + $0x54] sm:$0xf]
    %v91 = vld [vmem:[#allocation5 + $0x58] sm:$0xf]
    %v92 = vld [vmem:[#allocation5 + $0x5c] sm:$0xf]
    %v93 = vld [vmem:[#allocation5 + $0x60] sm:$0xf]
    %v94 = vld [vmem:[#allocation5 + $0x64] sm:$0xf]
    %v95 = vld [vmem:[#allocation5 + $0x68] sm:$0xf]
    %v96 = vld [vmem:[#allocation5 + $0x6c] sm:$0xf]
    %v97 = vld [vmem:[#allocation5 + $0x70] sm:$0xf]
    %v98 = vld [vmem:[#allocation5 + $0x74] sm:$0xf]
    %v99 = vld [vmem:[#allocation5 + $0x78] sm:$0xf]
    %v100 = vld [vmem:[#allocation5 + $0x7c] sm:$0xf]
    %v101 = vld [vmem:[%s2] sm:$0x1]
    %v103 = vlaneseq
    %v104 = vshrl.u32 %v103, 7
    %v105 = vsub.s32 0, %v104
    %v106 = vrot.slane %v101, %v105
    %v140 = vunpack.c.l.b16 %v69
    %v141 = vunpack.c.l.b16 %v70
    %v142 = vunpack.c.l.b16 %v71
    %v143 = vunpack.c.l.b16 %v72
    %v144 = vunpack.c.l.b16 %v73
    %v145 = vunpack.c.l.b16 %v74
    %v146 = vunpack.c.l.b16 %v75
    %v147 = vunpack.c.l.b16 %v76
    %v148 = vunpack.c.l.b16 %v77
    %v149 = vunpack.c.l.b16 %v78
    %v150 = vunpack.c.l.b16 %v79
    %v151 = vunpack.c.l.b16 %v80
    %v152 = vunpack.c.l.b16 %v81
    %v153 = vunpack.c.l.b16 %v82
    %v154 = vunpack.c.l.b16 %v83
    %v155 = vunpack.c.l.b16 %v84
    %v156 = vunpack.c.l.b16 %v85
    %v157 = vunpack.c.l.b16 %v86
    %v158 = vunpack.c.l.b16 %v87
    %v159 = vunpack.c.l.b16 %v88
    %v160 = vunpack.c.l.b16 %v89
    %v161 = vunpack.c.l.b16 %v90
    %v162 = vunpack.c.l.b16 %v91
    %v163 = vunpack.c.l.b16 %v92
    %v164 = vunpack.c.l.b16 %v93
    %v165 = vunpack.c.l.b16 %v94
    %v166 = vunpack.c.l.b16 %v95
    %v167 = vunpack.c.l.b16 %v96
    %v168 = vunpack.c.l.b16 %v97
    %v169 = vunpack.c.l.b16 %v98
    %v170 = vunpack.c.l.b16 %v99
    %v171 = vunpack.c.l.b16 %v100
    %v172 = vpack.c.b16 %v141, %v140
    %v173 = vpack.c.b16 %v143, %v142
    %v174 = vpack.c.b16 %v145, %v144
    %v175 = vpack.c.b16 %v147, %v146
    %v176 = vpack.c.b16 %v149, %v148
    %v177 = vpack.c.b16 %v151, %v150
    %v178 = vpack.c.b16 %v153, %v152
    %v179 = vpack.c.b16 %v155, %v154
    %v180 = vpack.c.b16 %v157, %v156
    %v181 = vpack.c.b16 %v159, %v158
    %v182 = vpack.c.b16 %v161, %v160
    %v183 = vpack.c.b16 %v163, %v162
    %v184 = vpack.c.b16 %v165, %v164
    %v185 = vpack.c.b16 %v167, %v166
    %v186 = vpack.c.b16 %v169, %v168
    %v187 = vpack.c.b16 %v171, %v170
    %204 = vmatprep.subr.bf16.mxu0 0
    %205 = vmatpush1.bf16.msra.mxu0 %v172
    %206 = vmatprep.subr.bf16.mxu0 0
    %207 = vmatpush1.bf16.msra.mxu0 %v173
    %208 = vmatprep.subr.bf16.mxu0 0
    %209 = vmatpush1.bf16.msra.mxu0 %v174
    %210 = vmatprep.subr.bf16.mxu0 0
    %211 = vmatpush1.bf16.msra.mxu0 %v175
    %212 = vmatprep.subr.bf16.mxu0 0
    %213 = vmatpush1.bf16.msra.mxu0 %v176
    %214 = vmatprep.subr.bf16.mxu0 0
    %215 = vmatpush1.bf16.msra.mxu0 %v177
    %216 = vmatprep.subr.bf16.mxu0 0
    %217 = vmatpush1.bf16.msra.mxu0 %v178
    %218 = vmatprep.subr.bf16.mxu0 0
    %219 = vmatpush1.bf16.msra.mxu0 %v179
    %220 = vmatprep.subr.bf16.mxu0 0
    %221 = vmatpush1.bf16.msra.mxu0 %v180
    %222 = vmatprep.subr.bf16.mxu0 0
    %223 = vmatpush1.bf16.msra.mxu0 %v181
    %224 = vmatprep.subr.bf16.mxu0 0
    %225 = vmatpush1.bf16.msra.mxu0 %v182
    %226 = vmatprep.subr.bf16.mxu0 0
    %227 = vmatpush1.bf16.msra.mxu0 %v183
    %228 = vmatprep.subr.bf16.mxu0 0
    %229 = vmatpush1.bf16.msra.mxu0 %v184
    %230 = vmatprep.subr.bf16.mxu0 0
    %231 = vmatpush1.bf16.msra.mxu0 %v185
    %232 = vmatprep.subr.bf16.mxu0 0
    %233 = vmatpush1.bf16.msra.mxu0 %v186
    %234 = vmatprep.subr.bf16.mxu0 0
    %235 = vmatpush1.bf16.msra.mxu0 %v187
    %236 = vmatprep.mubr.bf16.mxu0 %v68
    %237 = vmatmul.mubr.bf16.gmra.mrb[0].mxu0 %v67
    %v238 = vpop.f32.mrb[0].mxu0
    %v239 = vadd.f32 %v106, %v238
    %v240 = vpop.f32.mrb[0].mxu0
    %v241 = vpop.f32.mrb[0].mxu0
    %v242 = vadd.f32 %v106, %v241
    %v243 = vpop.f32.mrb[0].mxu0
    %244 = vdwg.mxu0
    %v245 = vpack.c.bf16 %v242, %v239
    %v246 = vld [vmem:[#allocation7] sm:$0xff]
    %v247 = vld [vmem:[#allocation7 + $0x8] sm:$0xff]
    %v248 = vld [vmem:[#allocation7 + $0x10] sm:$0xff]
    %v249 = vld [vmem:[#allocation7 + $0x18] sm:$0xff]
    %v250 = vld [vmem:[#allocation7 + $0x20] sm:$0xff]
    %v251 = vld [vmem:[#allocation7 + $0x28] sm:$0xff]
    %v252 = vld [vmem:[#allocation7 + $0x30] sm:$0xff]
    %v253 = vld [vmem:[#allocation7 + $0x38] sm:$0xff]
    %v254 = vld [vmem:[#allocation7 + $0x40] sm:$0xff]
    %v255 = vld [vmem:[#allocation7 + $0x48] sm:$0xff]
    %v256 = vld [vmem:[#allocation7 + $0x50] sm:$0xff]
    %v257 = vld [vmem:[#allocation7 + $0x58] sm:$0xff]
    %v258 = vld [vmem:[#allocation7 + $0x60] sm:$0xff]
    %v259 = vld [vmem:[#allocation7 + $0x68] sm:$0xff]
    %v260 = vld [vmem:[#allocation7 + $0x70] sm:$0xff]
    %v261 = vld [vmem:[#allocation7 + $0x78] sm:$0xff]
    %v262 = vld [vmem:[%s4] sm:$0x3]
    %v264 = vlaneseq
    %v265 = vshrl.u32 %v264, 7
    %v266 = vsub.s32 0, %v265
    %v267 = vrot.slane %v262, %v266
    %v268 = vlaneseq
    %v269 = vshrl.u32 %v268, 7
    %v270 = vsub.s32 1, %v269
    %v271 = vrot.slane %v262, %v270
    %v290 = vunpack.c.l.b16 %v246
    %v291 = vunpack.c.h.b16 %v246
    %v292 = vunpack.c.l.b16 %v247
    %v293 = vunpack.c.h.b16 %v247
    %v294 = vunpack.c.l.b16 %v248
    %v295 = vunpack.c.h.b16 %v248
    %v296 = vunpack.c.l.b16 %v249
    %v297 = vunpack.c.h.b16 %v249
    %v298 = vunpack.c.l.b16 %v250
    %v299 = vunpack.c.h.b16 %v250
    %v300 = vunpack.c.l.b16 %v251
    %v301 = vunpack.c.h.b16 %v251
    %v302 = vunpack.c.l.b16 %v252
    %v303 = vunpack.c.h.b16 %v252
    %v304 = vunpack.c.l.b16 %v253
    %v305 = vunpack.c.h.b16 %v253
    %v306 = vunpack.c.l.b16 %v254
    %v307 = vunpack.c.h.b16 %v254
    %v308 = vunpack.c.l.b16 %v255
    %v309 = vunpack.c.h.b16 %v255
    %v310 = vunpack.c.l.b16 %v256
    %v311 = vunpack.c.h.b16 %v256
    %v312 = vunpack.c.l.b16 %v257
    %v313 = vunpack.c.h.b16 %v257
    %v314 = vunpack.c.l.b16 %v258
    %v315 = vunpack.c.h.b16 %v258
    %v316 = vunpack.c.l.b16 %v259
    %v317 = vunpack.c.h.b16 %v259
    %v318 = vunpack.c.l.b16 %v260
    %v319 = vunpack.c.h.b16 %v260
    %v320 = vunpack.c.l.b16 %v261
    %v321 = vunpack.c.h.b16 %v261
    %v322 = vpack.c.b16 %v292, %v290
    %v323 = vpack.c.b16 %v293, %v291
    %v324 = vpack.c.b16 %v296, %v294
    %v325 = vpack.c.b16 %v297, %v295
    %v326 = vpack.c.b16 %v300, %v298
    %v327 = vpack.c.b16 %v301, %v299
    %v328 = vpack.c.b16 %v304, %v302
    %v329 = vpack.c.b16 %v305, %v303
    %v330 = vpack.c.b16 %v308, %v306
    %v331 = vpack.c.b16 %v309, %v307
    %v332 = vpack.c.b16 %v312, %v310
    %v333 = vpack.c.b16 %v313, %v311
    %v334 = vpack.c.b16 %v316, %v314
    %v335 = vpack.c.b16 %v317, %v315
    %v336 = vpack.c.b16 %v320, %v318
    %v337 = vpack.c.b16 %v321, %v319
    %354 = vmatprep.subr.bf16.mxu0 %v323
    %355 = vmatpush1.bf16.msra.mxu0 %v322
    %356 = vmatprep.subr.bf16.mxu0 %v325
    %357 = vmatpush1.bf16.msra.mxu0 %v324
    %358 = vmatprep.subr.bf16.mxu0 %v327
    %359 = vmatpush1.bf16.msra.mxu0 %v326
    %360 = vmatprep.subr.bf16.mxu0 %v329
    %361 = vmatpush1.bf16.msra.mxu0 %v328
    %362 = vmatprep.subr.bf16.mxu0 %v331
    %363 = vmatpush1.bf16.msra.mxu0 %v330
    %364 = vmatprep.subr.bf16.mxu0 %v333
    %365 = vmatpush1.bf16.msra.mxu0 %v332
    %366 = vmatprep.subr.bf16.mxu0 %v335
    %367 = vmatpush1.bf16.msra.mxu0 %v334
    %368 = vmatprep.subr.bf16.mxu0 %v337
    %369 = vmatpush1.bf16.msra.mxu0 %v336
    %370 = vmatprep.subr.bf16.mxu0 0
    %371 = vmatpush1.bf16.msra.mxu0 0
    %372 = vmatprep.subr.bf16.mxu0 0
    %373 = vmatpush1.bf16.msra.mxu0 0
    %374 = vmatprep.subr.bf16.mxu0 0
    %375 = vmatpush1.bf16.msra.mxu0 0
    %376 = vmatprep.subr.bf16.mxu0 0
    %377 = vmatpush1.bf16.msra.mxu0 0
    %378 = vmatprep.subr.bf16.mxu0 0
    %379 = vmatpush1.bf16.msra.mxu0 0
    %380 = vmatprep.subr.bf16.mxu0 0
    %381 = vmatpush1.bf16.msra.mxu0 0
    %382 = vmatprep.subr.bf16.mxu0 0
    %383 = vmatpush1.bf16.msra.mxu0 0
    %384 = vmatprep.subr.bf16.mxu0 0
    %385 = vmatpush1.bf16.msra.mxu0 0
    %386 = vmatprep.mubr.bf16.mxu0 0
    %387 = vmatmul.mubr.bf16.gmra.mrb[0].mxu0 %v245
    %v388 = vpop.f32.mrb[0].mxu0
    %v389 = vadd.f32 %v267, %v388
    %v390 = vpop.f32.mrb[0].mxu0
    %v391 = vadd.f32 %v271, %v390
    %v392 = vpop.f32.mrb[0].mxu0
    %v393 = vadd.f32 %v267, %v392
    %v394 = vpop.f32.mrb[0].mxu0
    %v395 = vadd.f32 %v271, %v394
    %396 = vdwg.mxu0
    %397 = vst [vmem:[#allocation8] sm:$0xff] %v389
    %398 = vst [vmem:[#allocation8 + $0x8] sm:$0xff] %v391
    %399 = vst [vmem:[#allocation8 + $0x10] sm:$0xff] %v393
    %400 = vst [vmem:[#allocation8 + $0x18] sm:$0xff] %v395
    // Predicated region
    $region34: #{tpu_custom_call.1} parent=1 // pred_check
      _
    $region35: #{tpu_custom_call.1} parent=1 // pred_check_branch
      %402 = sbr.rel (0) target = $region37
    $region36: #{tpu_custom_call.1} parent=1 // pred_region
      %s404 = ssub.s32 512, 512
      %405 = vsyncadd [#allocation4], %s404
      %s406 = sshll.u32 [#allocation8], 4
      %s407 = int_to_ptr.vmem [resolvable:$true] %s406
      %412 = dma.vmem_to_hbm [thread:$0]  %s407, 512, %s5, [#allocation4], 256, 256, 16
    $region37: #{tpu_custom_call.1} parent=1 // pred_fallthru
      _
    // Predicated region
    $region38: #{tpu_custom_call.1} parent=1 // pred_check
      _
    $region39: #{tpu_custom_call.1} parent=1 // pred_check_branch
      %414 = sbr.rel (0) target = $region41
    $region40: #{tpu_custom_call.1} parent=1 // pred_region
      %415 = dma.done [#allocation4], 512
    $region41: #{tpu_custom_call.1} parent=1 // pred_fallthru
      _
    %416 = vsyncpa [#allocation3], 1
    %417 = vsyncpa [#allocation6], 1
    %418 = vsyncpa [#allocation4], 1

</llo_original>
